<compile_context>
chip_gen: v7x
topology: tpu7x:2x2x1
jax: 0.10.0
libtpu: 0.0.40
codegen_flags: <defaults>
</compile_context>

<pallas_src>
import functools

import numpy as np

import jax
import jax.numpy as jnp
from jax import lax
from jax.experimental import pallas as pl
from jax.experimental.pallas import tpu as pltpu


def _apply_act(y, activation):
    if activation == "relu":
        return jnp.maximum(y, 0.0)
    if activation == "sigmoid":
        return jax.nn.sigmoid(y)
    if activation == "elu":
        return jnp.where(y > 0, y, jnp.expm1(y))
    if activation == "leakyrelu":
        return jnp.where(y > 0, y, 0.01 * y)
    raise ValueError(activation)


def _build_banded_weight(w_oihw, K, Cin, Cout, W, Wp):
    """Banded weight for the folded conv.

    Shape (K, Cin*Wp, Cout*W) with
      wb[kh, ci*Wp + (w+kw), co*W + w] = w[co, ci, kh, kw]
    so  out[h, co*W + w] = sum_{kh,kw,ci} (x*m)_pad[ci, h+kh, w+kw] * w[co,ci,kh,kw]
    """
    w_f32 = w_oihw.astype(jnp.float32)
    kh, kw, ci, co, w = np.meshgrid(
        np.arange(K), np.arange(K), np.arange(Cin), np.arange(Cout),
        np.arange(W), indexing="ij")
    rows = ci * Wp + w + kw
    cols = co * W + w
    vals = w_f32[co, ci, kh, kw]                       # gather -> (K,K,Cin,Cout,W)
    wb = jnp.zeros((K, Cin * Wp, Cout * W), jnp.float32)
    wb = wb.at[kh, rows, cols].set(vals)
    return wb


def _sparse_conv_kernel(xm_ref, m_ref, wb_ref, b_ref, out_ref, mout_ref, *,
                        K, Cout, W, M, activation):
    # xm_ref : (1, Mp, Cin*Wp)  zero-padded (x*mask) rows, channel-major width flatten
    # m_ref  : (1, Mp, Wp)      zero-padded mask rows
    # wb_ref : (K, Cin*Wp, Cout*W)  banded weight (bf16 or f32)
    # b_ref  : (1, Cout*W)      bias repeated along W (column = co*W + w)
    # out_ref : (1, M, Cout*W)  lane-dense conv output slab (128 lanes here)
    # mout_ref: (1, M, W)       max-pooled mask
    xm = xm_ref[0]                                     # (Mp, Cin*Wp) f32
    m2d = m_ref[0]                                     # (Mp, Wp)     f32

    # Conv: K banded matmuls on the MXU, bf16 inputs, f32 accumulation.
    lhs = xm[0:M, :].astype(wb_ref.dtype)
    acc = jnp.dot(lhs, wb_ref[0], preferred_element_type=jnp.float32)
    for kh in range(1, K):                             # small static unroll
        lhs = xm[kh:kh + M, :].astype(wb_ref.dtype)
        acc = acc + jnp.dot(lhs, wb_ref[kh],
                            preferred_element_type=jnp.float32)

    # Sparsity sum + mask max-pool, both separable (kh then kw), exact f32 on
    # the VPU/XLU.  Keeping the sum off the MXU keeps the matmul output at
    # exactly Cout*W lanes (one pass on a 128-wide MXU).
    rsum = m2d[0:M, :]
    rmax = rsum
    for kh in range(1, K):
        sl = m2d[kh:kh + M, :]
        rsum = rsum + sl
        rmax = jnp.maximum(rmax, sl)
    msum = rsum[:, 0:W]
    mmax = rmax[:, 0:W]
    for kw in range(1, K):
        msum = msum + rsum[:, kw:kw + W]
        mmax = jnp.maximum(mmax, rmax[:, kw:kw + W])

    # EUP reciprocal (approx) for the sparsity normalizer.
    norm = pl.reciprocal(msum + 1e-8, approx=True)     # (M, W)
    norm_t = jnp.concatenate([norm] * Cout, axis=1)    # (M, Cout*W)

    y = acc * norm_t + b_ref[...]                      # bias broadcasts over rows
    out_ref[0] = _apply_act(y, activation)             # unmasked 128-lane stores

    # Zero padding == torch's -inf-padded maxpool because mask >= 0 ({0,1}).
    mout_ref[0] = mmax


def _choose_images_per_step(N, Hp, target_rows):
    """Largest divisor G of N with G*Hp <= target_rows, keeping >=2 grid steps
    (v7x has 2 TensorCores) whenever N >= 2."""
    g_best = 1
    for g in range(1, N + 1):
        if N % g:
            continue
        if N >= 2 and N // g < 2:
            continue
        if g * Hp > target_rows:
            continue
        g_best = g
    return g_best


def sparse_conv(x_nchw, mask_nchw, w_oihw, bias, kernel_size,
                activation="relu", compute_dtype=jnp.bfloat16,
                images_per_step=None, target_rows=256):
    """x: (N, Cin, H, W), mask: (N, 1, H, W) non-negative, w: (Cout, Cin, K, K),
    bias: (Cout,).  Returns (y, new_mask) in NCHW, matching SparseConv.forward.
    compute_dtype=jnp.float32 for exact MXU taps (default bf16, f32 accumulate).
    """
    N, Cin, H, W = x_nchw.shape
    Cout = w_oihw.shape[0]
    K = kernel_size
    p = K // 2
    Hp, Wp = H + 2 * p, W + 2 * p

    G = images_per_step if images_per_step else _choose_images_per_step(N, Hp, target_rows)
    assert N % G == 0, "images_per_step must divide the batch"
    nsteps = N // G
    Mp = G * Hp              # padded rows per grid step
    M = Mp - 2 * p           # matmul/output rows per step (2p seam rows per extra image)

    x = x_nchw.astype(jnp.float32)
    m = mask_nchw.astype(jnp.float32)[:, 0]            # (N, H, W)

    # Layout plumbing: x*mask, zero pad, channel-major width flatten, batch
    # folded into rows.  A single contiguous copy fusion — no overlapping
    # halo'd tiles materialized in HBM.
    # TODO(synk): allow_input_fusion could fold even this copy into the
    # pallas_call input DMA.
    xm = x * m[:, None, :, :]
    xm_pad = jnp.pad(xm, ((0, 0), (0, 0), (p, p), (p, p)))      # (N, Cin, Hp, Wp)
    m_pad = jnp.pad(m, ((0, 0), (p, p), (p, p)))                # (N, Hp, Wp)
    xm_flat = (jnp.transpose(xm_pad, (0, 2, 1, 3))
               .reshape(N * Hp, Cin * Wp)
               .reshape(nsteps, Mp, Cin * Wp))                  # (nsteps, Mp, Cin*Wp)
    m_flat = m_pad.reshape(nsteps, Mp, Wp)                      # (nsteps, Mp, Wp)

    wb = _build_banded_weight(w_oihw, K, Cin, Cout, W, Wp).astype(compute_dtype)
    brow = jnp.repeat(bias.astype(jnp.float32), W).reshape(1, Cout * W)

    kernel = functools.partial(_sparse_conv_kernel, K=K, Cout=Cout, W=W, M=M,
                               activation=activation)

    out, mout = pl.pallas_call(
        kernel,
        out_shape=(jax.ShapeDtypeStruct((nsteps, M, Cout * W), jnp.float32),
                   jax.ShapeDtypeStruct((nsteps, M, W), jnp.float32)),
        grid=(nsteps,),
        in_specs=[
            pl.BlockSpec((1, Mp, Cin * Wp), lambda s: (s, 0, 0)),
            pl.BlockSpec((1, Mp, Wp), lambda s: (s, 0, 0)),
            pl.BlockSpec((K, Cin * Wp, Cout * W), lambda s: (0, 0, 0)),
            pl.BlockSpec((1, Cout * W), lambda s: (0, 0)),
        ],
        out_specs=(
            pl.BlockSpec((1, M, Cout * W), lambda s: (s, 0, 0)),
            pl.BlockSpec((1, M, W), lambda s: (s, 0, 0)),
        ),
        compiler_params=pltpu.CompilerParams(
            dimension_semantics=("parallel",),
            vmem_limit_bytes=32 * 1024 * 1024),
    )(xm_flat, m_flat, wb, brow)

    if M != G * H:
        # G > 1: drop the 2p seam-garbage rows between images stacked in a step.
        row_idx = (np.arange(G)[:, None] * Hp + np.arange(H)[None, :]).reshape(-1)
        out = out[:, row_idx, :]
        mout = mout[:, row_idx, :]

    # (nsteps, G*H, Cout*W) -> (N, H, Cout, W) -> NCHW
    y = out.reshape(N, H, Cout, W).transpose(0, 2, 1, 3)
    new_mask = mout.reshape(N, H, W)[:, None, :, :]
    return y, new_mask


def sparse_conv_ref(x_nchw, mask_nchw, w_oihw, bias, kernel_size, activation="relu"):
    """Pure-JAX reference (lax conv / reduce_window), exact torch semantics."""
    K = kernel_size
    x = jnp.transpose(x_nchw, (0, 2, 3, 1)).astype(jnp.float32)
    m = jnp.transpose(mask_nchw, (0, 2, 3, 1)).astype(jnp.float32)
    w = jnp.transpose(w_oihw, (2, 3, 1, 0)).astype(jnp.float32)
    xm = x * m
    conv = lax.conv_general_dilated(xm, w, (1, 1), "SAME",
                                    dimension_numbers=("NHWC", "HWIO", "NHWC"))
    ones = jnp.ones((K, K, 1, 1), jnp.float32)
    sp = lax.conv_general_dilated(m, ones, (1, 1), "SAME",
                                  dimension_numbers=("NHWC", "HWIO", "NHWC"))
    y = conv * (1.0 / (sp + 1e-8)) + bias.reshape(1, 1, 1, -1)
    y = _apply_act(y, activation)
    mp = lax.reduce_window(m, -jnp.inf, lax.max, (1, K, K, 1), (1, 1, 1, 1), "SAME")
    return jnp.transpose(y, (0, 3, 1, 2)), jnp.transpose(mp, (0, 3, 1, 2))


if __name__ == "__main__":
    N, Cin, Cout, H, W, K = 2, 4, 8, 16, 16, 3

    key = jax.random.PRNGKey(0)
    k1, k2, k3, k4 = jax.random.split(key, 4)
    x = jax.random.normal(k1, (N, Cin, H, W), jnp.float32)
    mask = (jax.random.uniform(k2, (N, 1, H, W)) > 0.3).astype(jnp.float32)

    # Deterministic synthetic Conv2d weight (Cout, Cin, K, K); PyTorch inits
    # self.bias to zeros — use small random values to exercise the bias path.
    fan = Cin * K * K
    bound = 1.0 / float(fan) ** 0.5
    w = jax.random.uniform(k3, (Cout, Cin, K, K), jnp.float32, -bound, bound)
    bias = 0.1 * jax.random.normal(k4, (Cout,), jnp.float32)

    y, m_out = sparse_conv(x, mask, w, bias, K, activation="relu")
    jax.block_until_ready((y, m_out))

    y_ref, m_ref = sparse_conv_ref(x, mask, w, bias, K, activation="relu")
    # 3e-2 tolerance covers the bf16 MXU taps (f32 accumulation) and the
    # approximate (EUP) reciprocal; the mask path is exact f32.
    assert jnp.allclose(y, y_ref, rtol=3e-2, atol=3e-2), "conv output mismatch"
    assert jnp.array_equal(m_out, m_ref), "max-pooled mask mismatch"

    print("KERNEL_OK")
</pallas_src>

<mosaic_0001>
module attributes {stable_mosaic.version = 11 : i64} {
  func.func @_sparse_conv_kernel(%arg0: i32, %arg1: memref<1x18x72xf32, #tpu.memory_space<vmem>>, %arg2: memref<1x18x18xf32, #tpu.memory_space<vmem>>, %arg3: memref<3x72x128xbf16, #tpu.memory_space<vmem>>, %arg4: memref<1x128xf32, #tpu.memory_space<vmem>>, %arg5: memref<1x16x128xf32, #tpu.memory_space<vmem>>, %arg6: memref<1x16x16xf32, #tpu.memory_space<vmem>>) attributes {dimension_semantics = [#tpu.dimension_semantics<parallel>], iteration_bounds = array<i64: 2>, scalar_prefetch = 0 : i64, scratch_operands = 0 : i64, tpu.core_type = #tpu.core_type<tc>, window_params = [{transform_indices = @transform_0, window_bounds = array<i64: 1, 18, 72>}, {transform_indices = @transform_1, window_bounds = array<i64: 1, 18, 18>}, {pipeline_mode = #tpu.pipeline_mode<synchronous>, transform_indices = @transform_2, window_bounds = array<i64: 3, 72, 128>}, {pipeline_mode = #tpu.pipeline_mode<synchronous>, transform_indices = @transform_3, window_bounds = array<i64: 1, 128>}, {transform_indices = @transform_4, window_bounds = array<i64: 1, 16, 128>}, {transform_indices = @transform_5, window_bounds = array<i64: 1, 16, 16>}]} {
    %c0 = arith.constant 0 : index
    %c0_0 = arith.constant 0 : index
    %c0_1 = arith.constant 0 : index
    %0 = vector.load %arg1[%c0, %c0_0, %c0_1] : memref<1x18x72xf32, #tpu.memory_space<vmem>>, vector<1x18x72xf32>
    %1 = vector.shape_cast %0 : vector<1x18x72xf32> to vector<18x72xf32>
    %c0_2 = arith.constant 0 : index
    %c0_3 = arith.constant 0 : index
    %c0_4 = arith.constant 0 : index
    %2 = vector.load %arg2[%c0_2, %c0_3, %c0_4] : memref<1x18x18xf32, #tpu.memory_space<vmem>>, vector<1x18x18xf32>
    %3 = vector.shape_cast %2 : vector<1x18x18xf32> to vector<18x18xf32>
    %4 = vector.extract_strided_slice %1 {offsets = [0, 0], sizes = [16, 72], strides = [1, 1]} : vector<18x72xf32> to vector<16x72xf32>
    %5 = arith.truncf %4 : vector<16x72xf32> to vector<16x72xbf16>
    %c0_5 = arith.constant 0 : index
    %c0_6 = arith.constant 0 : index
    %c0_7 = arith.constant 0 : index
    %6 = vector.load %arg3[%c0_5, %c0_6, %c0_7] : memref<3x72x128xbf16, #tpu.memory_space<vmem>>, vector<1x72x128xbf16>
    %7 = vector.shape_cast %6 : vector<1x72x128xbf16> to vector<72x128xbf16>
    %cst = arith.constant dense<0.000000e+00> : vector<16x128xf32>
    %8 = tpu.matmul %5, %7, %cst {dimension_numbers = #tpu.dot_dimension_numbers<[1], [0], [0], [1], [0, 0, 1, 1], [], []>} : vector<16x72xbf16>, vector<72x128xbf16>, vector<16x128xf32> -> vector<16x128xf32>
    %9 = vector.extract_strided_slice %1 {offsets = [1, 0], sizes = [16, 72], strides = [1, 1]} : vector<18x72xf32> to vector<16x72xf32>
    %10 = arith.truncf %9 : vector<16x72xf32> to vector<16x72xbf16>
    %c1 = arith.constant 1 : index
    %c0_8 = arith.constant 0 : index
    %c0_9 = arith.constant 0 : index
    %11 = vector.load %arg3[%c1, %c0_8, %c0_9] : memref<3x72x128xbf16, #tpu.memory_space<vmem>>, vector<1x72x128xbf16>
    %12 = vector.shape_cast %11 : vector<1x72x128xbf16> to vector<72x128xbf16>
    %cst_10 = arith.constant dense<0.000000e+00> : vector<16x128xf32>
    %13 = tpu.matmul %10, %12, %cst_10 {dimension_numbers = #tpu.dot_dimension_numbers<[1], [0], [0], [1], [0, 0, 1, 1], [], []>} : vector<16x72xbf16>, vector<72x128xbf16>, vector<16x128xf32> -> vector<16x128xf32>
    %14 = arith.addf %8, %13 : vector<16x128xf32>
    %15 = vector.extract_strided_slice %1 {offsets = [2, 0], sizes = [16, 72], strides = [1, 1]} : vector<18x72xf32> to vector<16x72xf32>
    %16 = arith.truncf %15 : vector<16x72xf32> to vector<16x72xbf16>
    %c2 = arith.constant 2 : index
    %c0_11 = arith.constant 0 : index
    %c0_12 = arith.constant 0 : index
    %17 = vector.load %arg3[%c2, %c0_11, %c0_12] : memref<3x72x128xbf16, #tpu.memory_space<vmem>>, vector<1x72x128xbf16>
    %18 = vector.shape_cast %17 : vector<1x72x128xbf16> to vector<72x128xbf16>
    %cst_13 = arith.constant dense<0.000000e+00> : vector<16x128xf32>
    %19 = tpu.matmul %16, %18, %cst_13 {dimension_numbers = #tpu.dot_dimension_numbers<[1], [0], [0], [1], [0, 0, 1, 1], [], []>} : vector<16x72xbf16>, vector<72x128xbf16>, vector<16x128xf32> -> vector<16x128xf32>
    %20 = arith.addf %14, %19 : vector<16x128xf32>
    %21 = vector.extract_strided_slice %3 {offsets = [0, 0], sizes = [16, 18], strides = [1, 1]} : vector<18x18xf32> to vector<16x18xf32>
    %22 = vector.extract_strided_slice %3 {offsets = [1, 0], sizes = [16, 18], strides = [1, 1]} : vector<18x18xf32> to vector<16x18xf32>
    %23 = arith.addf %21, %22 : vector<16x18xf32>
    %24 = arith.maximumf %21, %22 : vector<16x18xf32>
    %25 = vector.extract_strided_slice %3 {offsets = [2, 0], sizes = [16, 18], strides = [1, 1]} : vector<18x18xf32> to vector<16x18xf32>
    %26 = arith.addf %23, %25 : vector<16x18xf32>
    %27 = arith.maximumf %24, %25 : vector<16x18xf32>
    %28 = vector.extract_strided_slice %26 {offsets = [0, 0], sizes = [16, 16], strides = [1, 1]} : vector<16x18xf32> to vector<16x16xf32>
    %29 = vector.extract_strided_slice %27 {offsets = [0, 0], sizes = [16, 16], strides = [1, 1]} : vector<16x18xf32> to vector<16x16xf32>
    %30 = vector.extract_strided_slice %26 {offsets = [0, 1], sizes = [16, 16], strides = [1, 1]} : vector<16x18xf32> to vector<16x16xf32>
    %31 = arith.addf %28, %30 : vector<16x16xf32>
    %32 = vector.extract_strided_slice %27 {offsets = [0, 1], sizes = [16, 16], strides = [1, 1]} : vector<16x18xf32> to vector<16x16xf32>
    %33 = arith.maximumf %29, %32 : vector<16x16xf32>
    %34 = vector.extract_strided_slice %26 {offsets = [0, 2], sizes = [16, 16], strides = [1, 1]} : vector<16x18xf32> to vector<16x16xf32>
    %35 = arith.addf %31, %34 : vector<16x16xf32>
    %36 = vector.extract_strided_slice %27 {offsets = [0, 2], sizes = [16, 16], strides = [1, 1]} : vector<16x18xf32> to vector<16x16xf32>
    %37 = arith.maximumf %33, %36 : vector<16x16xf32>
    %cst_14 = arith.constant 9.99999993E-9 : f32
    %38 = vector.broadcast %cst_14 : f32 to vector<16x16xf32>
    %39 = arith.addf %35, %38 : vector<16x16xf32>
    %40 = tpu.reciprocal %39 {approx = true} : vector<16x16xf32> -> vector<16x16xf32>
    %41 = tpu.concatenate %40, %40, %40, %40, %40, %40, %40, %40 in 1 : vector<16x16xf32>, vector<16x16xf32>, vector<16x16xf32>, vector<16x16xf32>, vector<16x16xf32>, vector<16x16xf32>, vector<16x16xf32>, vector<16x16xf32> -> vector<16x128xf32>
    %42 = arith.mulf %20, %41 : vector<16x128xf32>
    %c0_15 = arith.constant 0 : index
    %c0_16 = arith.constant 0 : index
    %43 = vector.load %arg4[%c0_15, %c0_16] : memref<1x128xf32, #tpu.memory_space<vmem>>, vector<1x128xf32>
    %44 = vector.broadcast %43 : vector<1x128xf32> to vector<16x128xf32>
    %45 = arith.addf %42, %44 : vector<16x128xf32>
    %cst_17 = arith.constant 0.000000e+00 : f32
    %46 = vector.broadcast %cst_17 : f32 to vector<16x128xf32>
    %47 = arith.maximumf %45, %46 : vector<16x128xf32>
    %c0_18 = arith.constant 0 : index
    %c0_19 = arith.constant 0 : index
    %c0_20 = arith.constant 0 : index
    %48 = vector.load %arg5[%c0_18, %c0_19, %c0_20] : memref<1x16x128xf32, #tpu.memory_space<vmem>>, vector<1x16x128xf32>
    %49 = vector.shape_cast %48 : vector<1x16x128xf32> to vector<16x128xf32>
    %50 = vector.shape_cast %47 : vector<16x128xf32> to vector<1x16x128xf32>
    tpu.vector_store %arg5[%c0_18, %c0_19, %c0_20], %50 {strides = array<i32>} : memref<1x16x128xf32, #tpu.memory_space<vmem>>, vector<1x16x128xf32>,
    %c0_21 = arith.constant 0 : index
    %c0_22 = arith.constant 0 : index
    %c0_23 = arith.constant 0 : index
    %51 = vector.load %arg6[%c0_21, %c0_22, %c0_23] : memref<1x16x16xf32, #tpu.memory_space<vmem>>, vector<1x16x16xf32>
    %52 = vector.shape_cast %51 : vector<1x16x16xf32> to vector<16x16xf32>
    %53 = vector.shape_cast %37 : vector<16x16xf32> to vector<1x16x16xf32>
    tpu.vector_store %arg6[%c0_21, %c0_22, %c0_23], %53 {strides = array<i32>} : memref<1x16x16xf32, #tpu.memory_space<vmem>>, vector<1x16x16xf32>,
    return
  }
  func.func @transform_0(%arg0: i32) -> (i32, i32, i32) {
    %c0_i32 = arith.constant 0 : i32
    %c0_i32_0 = arith.constant 0 : i32
    %c0_i32_1 = arith.constant 0 : i32
    return %arg0, %c0_i32, %c0_i32_0 : i32, i32, i32
  }
  func.func @transform_1(%arg0: i32) -> (i32, i32, i32) {
    %c0_i32 = arith.constant 0 : i32
    %c0_i32_0 = arith.constant 0 : i32
    %c0_i32_1 = arith.constant 0 : i32
    return %arg0, %c0_i32, %c0_i32_0 : i32, i32, i32
  }
  func.func @transform_2(%arg0: i32) -> (i32, i32, i32) {
    %c0_i32 = arith.constant 0 : i32
    %c0_i32_0 = arith.constant 0 : i32
    %c0_i32_1 = arith.constant 0 : i32
    %c0_i32_2 = arith.constant 0 : i32
    return %c0_i32, %c0_i32_0, %c0_i32_1 : i32, i32, i32
  }
  func.func @transform_3(%arg0: i32) -> (i32, i32) {
    %c0_i32 = arith.constant 0 : i32
    %c0_i32_0 = arith.constant 0 : i32
    %c0_i32_1 = arith.constant 0 : i32
    return %c0_i32, %c0_i32_0 : i32, i32
  }
  func.func @transform_4(%arg0: i32) -> (i32, i32, i32) {
    %c0_i32 = arith.constant 0 : i32
    %c0_i32_0 = arith.constant 0 : i32
    %c0_i32_1 = arith.constant 0 : i32
    return %arg0, %c0_i32, %c0_i32_0 : i32, i32, i32
  }
  func.func @transform_5(%arg0: i32) -> (i32, i32, i32) {
    %c0_i32 = arith.constant 0 : i32
    %c0_i32_0 = arith.constant 0 : i32
    %c0_i32_1 = arith.constant 0 : i32
    return %arg0, %c0_i32, %c0_i32_0 : i32, i32, i32
  }
}

</mosaic_0001>

<llo_original>
// kernel: tpu_custom_call.1
$region0: #{tpu_custom_call.1}
  #allocation0 [shape = 'u32[]', space=smem, size = 0x4, offset = 0x4, fixed_abs, tag = 'smem constant byte address 0x4 - core index']
  #allocation1 [shape = 'u32[144,128]{1,0:T(1,128)}', space=vmem, size = 0x12000, scoped, tag = 'internal scratch']
  %s0 = inlined_call_operand.vmem [shape: f32[2,18,72], index: 0, kind: input, shape index: {}]
  %s1 = inlined_call_operand.vmem [shape: f32[2,18,18], index: 1, kind: input, shape index: {}]
  %s2 = inlined_call_operand.vmem [shape: bf16[3,72,128], index: 2, kind: input, shape index: {}]
  %s3 = inlined_call_operand.vmem [shape: f32[1,128], index: 3, kind: input, shape index: {}]
  %s4 = inlined_call_operand.hbm [shape: f32[2,16,128], index: 4, kind: output, shape index: {0}]
  %s5 = inlined_call_operand.hbm [shape: f32[2,16,16], index: 5, kind: output, shape index: {1}]
  %6 = xla_tuple %s4, %s5
  %s7 = sld [smem:[#allocation0]]
  $region57: #{tpu_custom_call.1} parent=0
    _
  %s9 = ssub.s32 1, %s7
  %s10 = scalar_select 0, %s9, %s7
  $region1: #{tpu_custom_call.1} parent=0
    #allocation2 [shape = 'u8[16384]{0}', space=vmem, size = 0x4000, scoped, tag = 'output window, operand 0']
    #allocation3 [shape = 's32[2]{0}', space=sflag, size = 0x8, scoped, tag = 'scoped memory for tpu_custom_call.1']
    #allocation4 [shape = 'u8[16384]{0}', space=vmem, size = 0x4000, scoped, tag = 'output window, operand 1']
    #allocation5 [shape = 's32[2]{0}', space=sflag, size = 0x8, scoped, tag = 'scoped memory for tpu_custom_call.1']
    %11 = vsyncpa [#allocation3], 0
    %s12 = scalar_lea.sflag [#allocation3], 1
    %13 = vsyncpa %s12, 0
    %14 = vsyncpa [#allocation5], 0
    %s15 = scalar_lea.sflag [#allocation5], 1
    %16 = vsyncpa %s15, 0
    loop: start=0, step=1, limit=4
    $region2: #{tpu_custom_call.1} parent=1 // loop_pre_header
      _
    $region3: #{tpu_custom_call.1} parent=1 // loop_header
      %s18 = sphi 0, %s22
      %p19 = scmp.ge.s32.totalorder %s18, 4
      %s28 = sphi 0, %s30
      %s31 = sphi 0, %s28
      %s32 = sphi 0, %s31
      %s48 = sphi 0, %s32
      %s54 = sphi 0, %s56
      %s57 = sphi 0, %s54
      %s58 = sphi 0, %s57
      %s74 = sphi 0, %s58
      %s78 = sphi 0, %s78
      %s80 = sphi 0, %s78
      %s81 = sphi 0, %s80
      %s95 = sphi 0, %s81
      %s99 = sphi 0, %s99
      %s101 = sphi 0, %s99
      %s102 = sphi 0, %s101
      %s116 = sphi 0, %s102
      %s122 = sphi 0, %s124
      %s125 = sphi 0, %s122
      %s126 = sphi 0, %s125
      %s142 = sphi 0, %s126
      %s148 = sphi 0, %s150
      %s151 = sphi 0, %s148
      %s152 = sphi 0, %s151
      %s168 = sphi 0, %s152
    $region4: #{tpu_custom_call.1} parent=1 // loop_header_branch
      %21 = sbr.rel (%p19) target = $region8
    $region5: #{tpu_custom_call.1} parent=1 // loop_body
      %s23 = ssub.s32 %s18, 1
      %s24 = ssub.s32 %s18, 2
      %s25 = sadd.s32 %s18, 1
      %s26 = ssub.s32 %s18, %s25
      %p27 = scmp.eq.s32.totalorder %s26, 0
      %s29 = sadd.s32 %s28, 1
      %s30 = scalar_select %p27, %s28, %s29
      %p33 = pneg %p27
      %p34 = scmp.eq.s32.totalorder %s18, 1
      %p35 = por %p33, %p34
      %p36 = scmp.ne.s32.totalorder %s28, %s31
      %p37 = scmp.eq.s32.totalorder %s18, 0
      %p38 = por %p36, %p37
      %p39 = scmp.ne.s32.totalorder %s28, %s31
      %p40 = scmp.eq.s32.totalorder %s23, 1
      %p41 = por %p39, %p40
      %p42 = scmp.ne.s32.totalorder %s31, %s32
      %p43 = scmp.eq.s32.totalorder %s23, 0
      %p44 = por %p42, %p43
      %p45 = scmp.ne.s32.totalorder %s31, %s32
      %p46 = scmp.eq.s32.totalorder %s24, 1
      %p47 = por %p45, %p46
      %p49 = scmp.ne.s32.totalorder %s32, %s48
      %p50 = scmp.eq.s32.totalorder %s24, 0
      %p51 = por %p49, %p50
      %s52 = ssub.s32 %s18, %s25
      %p53 = scmp.eq.s32.totalorder %s52, 0
      %s55 = sadd.s32 %s54, 1
      %s56 = scalar_select %p53, %s54, %s55
      %p59 = pneg %p53
      %p60 = scmp.eq.s32.totalorder %s18, 1
      %p61 = por %p59, %p60
      %p62 = scmp.ne.s32.totalorder %s54, %s57
      %p63 = scmp.eq.s32.totalorder %s18, 0
      %p64 = por %p62, %p63
      %p65 = scmp.ne.s32.totalorder %s54, %s57
      %p66 = scmp.eq.s32.totalorder %s23, 1
      %p67 = por %p65, %p66
      %p68 = scmp.ne.s32.totalorder %s57, %s58
      %p69 = scmp.eq.s32.totalorder %s23, 0
      %p70 = por %p68, %p69
      %p71 = scmp.ne.s32.totalorder %s57, %s58
      %p72 = scmp.eq.s32.totalorder %s24, 1
      %p73 = por %p71, %p72
      %p75 = scmp.ne.s32.totalorder %s58, %s74
      %p76 = scmp.eq.s32.totalorder %s24, 0
      %p77 = por %p75, %p76
      %s79 = sadd.s32 %s78, 1
      %p82 = scmp.eq.s32.totalorder %s18, 1
      %p83 = scmp.ne.s32.totalorder %s78, %s80
      %p84 = scmp.eq.s32.totalorder %s18, 0
      %p85 = por %p83, %p84
      %p86 = scmp.ne.s32.totalorder %s78, %s80
      %p87 = scmp.eq.s32.totalorder %s23, 1
      %p88 = por %p86, %p87
      %p89 = scmp.ne.s32.totalorder %s80, %s81
      %p90 = scmp.eq.s32.totalorder %s23, 0
      %p91 = por %p89, %p90
      %p92 = scmp.ne.s32.totalorder %s80, %s81
      %p93 = scmp.eq.s32.totalorder %s24, 1
      %p94 = por %p92, %p93
      %p96 = scmp.ne.s32.totalorder %s81, %s95
      %p97 = scmp.eq.s32.totalorder %s24, 0
      %p98 = por %p96, %p97
      %s100 = sadd.s32 %s99, 1
      %p103 = scmp.eq.s32.totalorder %s18, 1
      %p104 = scmp.ne.s32.totalorder %s99, %s101
      %p105 = scmp.eq.s32.totalorder %s18, 0
      %p106 = por %p104, %p105
      %p107 = scmp.ne.s32.totalorder %s99, %s101
      %p108 = scmp.eq.s32.totalorder %s23, 1
      %p109 = por %p107, %p108
      %p110 = scmp.ne.s32.totalorder %s101, %s102
      %p111 = scmp.eq.s32.totalorder %s23, 0
      %p112 = por %p110, %p111
      %p113 = scmp.ne.s32.totalorder %s101, %s102
      %p114 = scmp.eq.s32.totalorder %s24, 1
      %p115 = por %p113, %p114
      %p117 = scmp.ne.s32.totalorder %s102, %s116
      %p118 = scmp.eq.s32.totalorder %s24, 0
      %p119 = por %p117, %p118
      %s120 = ssub.s32 %s18, %s25
      %p121 = scmp.eq.s32.totalorder %s120, 0
      %s123 = sadd.s32 %s122, 1
      %s124 = scalar_select %p121, %s122, %s123
      %p127 = pneg %p121
      %p128 = scmp.eq.s32.totalorder %s18, 1
      %p129 = por %p127, %p128
      %p130 = scmp.ne.s32.totalorder %s122, %s125
      %p131 = scmp.eq.s32.totalorder %s18, 0
      %p132 = por %p130, %p131
      %p133 = scmp.ne.s32.totalorder %s122, %s125
      %p134 = scmp.eq.s32.totalorder %s23, 1
      %p135 = por %p133, %p134
      %p136 = scmp.ne.s32.totalorder %s125, %s126
      %p137 = scmp.eq.s32.totalorder %s23, 0
      %p138 = por %p136, %p137
      %p139 = scmp.ne.s32.totalorder %s125, %s126
      %p140 = scmp.eq.s32.totalorder %s24, 1
      %p141 = por %p139, %p140
      %p143 = scmp.ne.s32.totalorder %s126, %s142
      %p144 = scmp.eq.s32.totalorder %s24, 0
      %p145 = por %p143, %p144
      %s146 = ssub.s32 %s18, %s25
      %p147 = scmp.eq.s32.totalorder %s146, 0
      %s149 = sadd.s32 %s148, 1
      %s150 = scalar_select %p147, %s148, %s149
      %p153 = pneg %p147
      %p154 = scmp.eq.s32.totalorder %s18, 1
      %p155 = por %p153, %p154
      %p156 = scmp.ne.s32.totalorder %s148, %s151
      %p157 = scmp.eq.s32.totalorder %s18, 0
      %p158 = por %p156, %p157
      %p159 = scmp.ne.s32.totalorder %s148, %s151
      %p160 = scmp.eq.s32.totalorder %s23, 1
      %p161 = por %p159, %p160
      %p162 = scmp.ne.s32.totalorder %s151, %s152
      %p163 = scmp.eq.s32.totalorder %s23, 0
      %p164 = por %p162, %p163
      %p165 = scmp.ne.s32.totalorder %s151, %s152
      %p166 = scmp.eq.s32.totalorder %s24, 1
      %p167 = por %p165, %p166
      %p169 = scmp.ne.s32.totalorder %s152, %s168
      %p170 = scmp.eq.s32.totalorder %s24, 0
      %p171 = por %p169, %p170
      %p172 = scmp.le.s32.totalorder 1, %s18
      %p173 = scmp.lt.s32.totalorder %s18, 3
      %p174 = pnand %p172, %p173
      %p175 = pneg %p174
      // Predicated region
      $region9: #{tpu_custom_call.1} parent=5 // pred_check
        _
      $region10: #{tpu_custom_call.1} parent=5 // pred_check_branch
        %177 = sbr.rel (%p174) target = $region12
      $region11: #{tpu_custom_call.1} parent=5 // pred_region
        %s178 = ssub.s32 %s18, 1
        // Predicated region
        $region13: #{tpu_custom_call.1} parent=11 // pred_check
          %p179 = pneg %p91
        $region14: #{tpu_custom_call.1} parent=11 // pred_check_branch
          %181 = sbr.rel (%p179) target = $region16
        $region15: #{tpu_custom_call.1} parent=11 // pred_region
          _
        $region16: #{tpu_custom_call.1} parent=11 // pred_fallthru
          _
        // Predicated region
        $region17: #{tpu_custom_call.1} parent=11 // pred_check
          %p182 = pneg %p112
        $region18: #{tpu_custom_call.1} parent=11 // pred_check_branch
          %184 = sbr.rel (%p182) target = $region20
        $region19: #{tpu_custom_call.1} parent=11 // pred_region
          _
        $region20: #{tpu_custom_call.1} parent=11 // pred_fallthru
          _
      $region12: #{tpu_custom_call.1} parent=5 // pred_fallthru
        _
      %p185 = scmp.lt.s32.totalorder %s18, 2
      // Predicated region
      $region21: #{tpu_custom_call.1} parent=5 // pred_check
        %p186 = pneg %p185
      $region22: #{tpu_custom_call.1} parent=5 // pred_check_branch
        %188 = sbr.rel (%p186) target = $region24
      $region23: #{tpu_custom_call.1} parent=5 // pred_region
        // Predicated region
        $region25: #{tpu_custom_call.1} parent=23 // pred_check
          %p189 = pneg %p38
        $region26: #{tpu_custom_call.1} parent=23 // pred_check_branch
          %191 = sbr.rel (%p189) target = $region28
        $region27: #{tpu_custom_call.1} parent=23 // pred_region
          %p192 = scmp.lt.s32.totalorder %s18, 1
          %s193 = scalar_select %p192, %s18, 1
          %s194 = smul.addr %s193, 3
          %s195 = smul.addr %s194, 8
          %s196 = scalar_lea.vmem %s0, %s195
        $region28: #{tpu_custom_call.1} parent=23 // pred_fallthru
          _
        // Predicated region
        $region29: #{tpu_custom_call.1} parent=23 // pred_check
          %p197 = pneg %p64
        $region30: #{tpu_custom_call.1} parent=23 // pred_check_branch
          %199 = sbr.rel (%p197) target = $region32
        $region31: #{tpu_custom_call.1} parent=23 // pred_region
          %p200 = scmp.lt.s32.totalorder %s18, 1
          %s201 = scalar_select %p200, %s18, 1
          %s202 = smul.addr %s201, 3
          %s203 = smul.addr %s202, 8
          %s204 = scalar_lea.vmem %s1, %s203
        $region32: #{tpu_custom_call.1} parent=23 // pred_fallthru
          _
      $region24: #{tpu_custom_call.1} parent=5 // pred_fallthru
        _
      %p205 = scmp.le.s32.totalorder 1, %s18
      %p206 = scmp.lt.s32.totalorder %s18, 3
      %p207 = pnand %p205, %p206
      %p208 = pneg %p207
      // Predicated region
      $region33: #{tpu_custom_call.1} parent=5 // pred_check
        _
      $region34: #{tpu_custom_call.1} parent=5 // pred_check_branch
        %210 = sbr.rel (%p207) target = $region36
      $region35: #{tpu_custom_call.1} parent=5 // pred_region
        %s211 = ssub.s32 %s18, 1
        %p212 = scmp.lt.s32.totalorder %s23, 1
        %s213 = scalar_select %p212, %s23, 1
        %s214 = smul.addr %s213, 3
        %s215 = smul.addr %s214, 8
        %s216 = scalar_lea.vmem %s0, %s215
        %p217 = pneg %p44
        %p218 = pneg %p41
        %p219 = scmp.lt.s32.totalorder %s23, 1
        %s220 = scalar_select %p219, %s23, 1
        %s221 = smul.addr %s220, 3
        %s222 = smul.addr %s221, 8
        %s223 = scalar_lea.vmem %s1, %s222
        %p224 = pneg %p70
        %p225 = pneg %p67
        %p226 = pneg %p91
        %p227 = pneg %p88
        %p228 = pneg %p112
        %p229 = pneg %p109
        %p230 = pneg %p138
        %p231 = pneg %p135
        %s232 = sand.u32 %s125, 1
        %s233 = scalar_lea.sflag [#allocation3], %s232
        %s234 = sand.u32 %s125, 1
        %s235 = smul.addr %s234, 16
        %s236 = scalar_lea.vmem [#allocation2], %s235
        %p237 = pneg %p164
        %p238 = pneg %p161
        %s239 = sand.u32 %s151, 1
        %s240 = scalar_lea.sflag [#allocation5], %s239
        %s241 = sand.u32 %s151, 1
        %s242 = smul.addr %s241, 16
        %s243 = scalar_lea.vmem [#allocation4], %s242
        %p244 = scmp.lt.s32.totalorder %s23, 1
        %s245 = scalar_select %p244, %s23, 1
        %s246 = smul.addr %s245, 3
        %s247 = smul.addr %s246, 8
        %s248 = scalar_lea.vmem %s0, %s247
        %p249 = scmp.lt.s32.totalorder %s23, 1
        %s250 = scalar_select %p249, %s23, 1
        %s251 = smul.addr %s250, 3
        %s252 = smul.addr %s251, 8
        %s253 = scalar_lea.vmem %s1, %s252
        %v255 = vld [vmem:[%s248] sm:$0xff]
        %v256 = vld [vmem:[%s248 + $0x8] sm:$0xff]
        %v257 = vld [vmem:[%s248 + $0x10] sm:$0x3]
        %v258 = vld [vmem:[%s253] sm:$0xff]
        %v259 = vld [vmem:[%s253 + $0x8] sm:$0xff]
        %v260 = vld [vmem:[%s253 + $0x10] sm:$0x3]
        %v261 = vpack.c.bf16 %v256, %v255
        %v262 = vld [vmem:[%s2] sm:$0xf]
        %v263 = vld [vmem:[%s2 + $0x4] sm:$0xf]
        %v264 = vld [vmem:[%s2 + $0x8] sm:$0xf]
        %v265 = vld [vmem:[%s2 + $0xc] sm:$0xf]
        %v266 = vld [vmem:[%s2 + $0x10] sm:$0xf]
        %v267 = vld [vmem:[%s2 + $0x14] sm:$0xf]
        %v268 = vld [vmem:[%s2 + $0x18] sm:$0xf]
        %v269 = vld [vmem:[%s2 + $0x1c] sm:$0xf]
        %v270 = vld [vmem:[%s2 + $0x20] sm:$0xf]
        %v271 = vpack.c.bf16 %v257, %v257
        %s272 = scalar_lea.vmem %s2, 36
        %v273 = vld [vmem:[%s272] sm:$0xf]
        %v274 = vld [vmem:[%s272 + $0x4] sm:$0xf]
        %v275 = vld [vmem:[%s272 + $0x8] sm:$0xf]
        %v276 = vld [vmem:[%s272 + $0xc] sm:$0xf]
        %v277 = vld [vmem:[%s272 + $0x10] sm:$0xf]
        %v278 = vld [vmem:[%s272 + $0x14] sm:$0xf]
        %v279 = vld [vmem:[%s272 + $0x18] sm:$0xf]
        %v280 = vld [vmem:[%s272 + $0x1c] sm:$0xf]
        %v281 = vld [vmem:[%s272 + $0x20] sm:$0xf]
        %vm282 = vsmask.f32 7424
        %v284 = vshrl.u32 %v261, 16
        %v286 = vshll.u32 %v261, 16
        %v288 = vrot.slane %v286, 1
        %v289 = vor.u32 %v284, %v288
        %v291 = vshll.u32 %v271, 16
        %v293 = vrot.slane %v291, 1
        %v294 = vsel %vm282, %v289, %v293
        %v304 = vunpack.c.l.b16 %v273
        %v305 = vunpack.c.l.b16 %v274
        %v306 = vunpack.c.l.b16 %v275
        %v307 = vunpack.c.l.b16 %v276
        %v308 = vunpack.c.l.b16 %v277
        %v309 = vunpack.c.l.b16 %v278
        %v310 = vunpack.c.l.b16 %v279
        %v311 = vunpack.c.l.b16 %v280
        %v312 = vunpack.c.l.b16 %v281
        %v313 = vpack.c.b16 %v305, %v304
        %v314 = vpack.c.b16 %v307, %v306
        %v315 = vpack.c.b16 %v309, %v308
        %v316 = vpack.c.b16 %v311, %v310
        %v317 = vpack.c.b16 %v312, %v312
        %vm322 = vcmask 588800
        %v324 = vsel %vm322, %v294, 0
        %vm326 = vcmask 1043456
        %v328 = vsel %vm326, %v317, 0
        %330 = vmatprep.subr.bf16.mxu0 0
        %331 = vmatpush1.bf16.msra.mxu0 %v313
        %332 = vmatprep.subr.bf16.mxu0 0
        %333 = vmatpush1.bf16.msra.mxu0 %v314
        %334 = vmatprep.subr.bf16.mxu0 0
        %335 = vmatpush1.bf16.msra.mxu0 %v315
        %336 = vmatprep.subr.bf16.mxu0 0
        %337 = vmatpush1.bf16.msra.mxu0 %v316
        %338 = vmatprep.subr.bf16.mxu0 0
        %339 = vmatpush1.bf16.msra.mxu0 %v328
        %340 = vmatprep.subr.bf16.mxu0 0
        %341 = vmatpush1.bf16.msra.mxu0 0
        %342 = vmatprep.subr.bf16.mxu0 0
        %343 = vmatpush1.bf16.msra.mxu0 0
        %344 = vmatprep.subr.bf16.mxu0 0
        %345 = vmatpush1.bf16.msra.mxu0 0
        %346 = vmatprep.subr.bf16.mxu0 0
        %347 = vmatpush1.bf16.msra.mxu0 0
        %348 = vmatprep.subr.bf16.mxu0 0
        %349 = vmatpush1.bf16.msra.mxu0 0
        %350 = vmatprep.subr.bf16.mxu0 0
        %351 = vmatpush1.bf16.msra.mxu0 0
        %352 = vmatprep.subr.bf16.mxu0 0
        %353 = vmatpush1.bf16.msra.mxu0 0
        %354 = vmatprep.subr.bf16.mxu0 0
        %355 = vmatpush1.bf16.msra.mxu0 0
        %356 = vmatprep.subr.bf16.mxu0 0
        %357 = vmatpush1.bf16.msra.mxu0 0
        %358 = vmatprep.subr.bf16.mxu0 0
        %359 = vmatpush1.bf16.msra.mxu0 0
        %360 = vmatprep.subr.bf16.mxu0 0
        %361 = vmatpush1.bf16.msra.mxu0 0
        %362 = vmatprep.mubr.bf16.mxu0 0
        %363 = vmatmul.mubr.bf16.gmra.mrb[0].mxu0 %v324
        %v364 = vpop.f32.mrb[0].mxu0
        %v365 = vadd.f32 0.0, %v364
        %v366 = vpop.f32.mrb[0].mxu0
        %v367 = vpop.f32.mrb[0].mxu0
        %v368 = vadd.f32 0.0, %v367
        %v369 = vpop.f32.mrb[0].mxu0
        %370 = vdwg.mxu0
        %v380 = vunpack.c.l.b16 %v262
        %v381 = vunpack.c.l.b16 %v263
        %v382 = vunpack.c.l.b16 %v264
        %v383 = vunpack.c.l.b16 %v265
        %v384 = vunpack.c.l.b16 %v266
        %v385 = vunpack.c.l.b16 %v267
        %v386 = vunpack.c.l.b16 %v268
        %v387 = vunpack.c.l.b16 %v269
        %v388 = vunpack.c.l.b16 %v270
        %v389 = vpack.c.b16 %v381, %v380
        %v390 = vpack.c.b16 %v383, %v382
        %v391 = vpack.c.b16 %v385, %v384
        %v392 = vpack.c.b16 %v387, %v386
        %v393 = vpack.c.b16 %v388, %v388
        %v398 = vsel %vm322, %v261, 0
        %v401 = vsel %vm326, %v393, 0
        %403 = vmatprep.subr.bf16.mxu0 0
        %404 = vmatpush1.bf16.msra.mxu0 %v389
        %405 = vmatprep.subr.bf16.mxu0 0
        %406 = vmatpush1.bf16.msra.mxu0 %v390
        %407 = vmatprep.subr.bf16.mxu0 0
        %408 = vmatpush1.bf16.msra.mxu0 %v391
        %409 = vmatprep.subr.bf16.mxu0 0
        %410 = vmatpush1.bf16.msra.mxu0 %v392
        %411 = vmatprep.subr.bf16.mxu0 0
        %412 = vmatpush1.bf16.msra.mxu0 %v401
        %413 = vmatprep.subr.bf16.mxu0 0
        %414 = vmatpush1.bf16.msra.mxu0 0
        %415 = vmatprep.subr.bf16.mxu0 0
        %416 = vmatpush1.bf16.msra.mxu0 0
        %417 = vmatprep.subr.bf16.mxu0 0
        %418 = vmatpush1.bf16.msra.mxu0 0
        %419 = vmatprep.subr.bf16.mxu0 0
        %420 = vmatpush1.bf16.msra.mxu0 0
        %421 = vmatprep.subr.bf16.mxu0 0
        %422 = vmatpush1.bf16.msra.mxu0 0
        %423 = vmatprep.subr.bf16.mxu0 0
        %424 = vmatpush1.bf16.msra.mxu0 0
        %425 = vmatprep.subr.bf16.mxu0 0
        %426 = vmatpush1.bf16.msra.mxu0 0
        %427 = vmatprep.subr.bf16.mxu0 0
        %428 = vmatpush1.bf16.msra.mxu0 0
        %429 = vmatprep.subr.bf16.mxu0 0
        %430 = vmatpush1.bf16.msra.mxu0 0
        %431 = vmatprep.subr.bf16.mxu0 0
        %432 = vmatpush1.bf16.msra.mxu0 0
        %433 = vmatprep.subr.bf16.mxu0 0
        %434 = vmatpush1.bf16.msra.mxu0 0
        %435 = vmatprep.mubr.bf16.mxu0 0
        %436 = vmatmul.mubr.bf16.gmra.mrb[0].mxu0 %v398
        %v437 = vpop.f32.mrb[0].mxu0
        %v438 = vadd.f32 %v365, %v437
        %v439 = vpop.f32.mrb[0].mxu0
        %v440 = vpop.f32.mrb[0].mxu0
        %v441 = vadd.f32 %v368, %v440
        %v442 = vpop.f32.mrb[0].mxu0
        %443 = vdwg.mxu0
        %s444 = scalar_lea.vmem %s2, 72
        %v445 = vld [vmem:[%s444] sm:$0xf]
        %v446 = vld [vmem:[%s444 + $0x4] sm:$0xf]
        %v447 = vld [vmem:[%s444 + $0x8] sm:$0xf]
        %v448 = vld [vmem:[%s444 + $0xc] sm:$0xf]
        %v449 = vld [vmem:[%s444 + $0x10] sm:$0xf]
        %v450 = vld [vmem:[%s444 + $0x14] sm:$0xf]
        %v451 = vld [vmem:[%s444 + $0x18] sm:$0xf]
        %v452 = vld [vmem:[%s444 + $0x1c] sm:$0xf]
        %v453 = vld [vmem:[%s444 + $0x20] sm:$0xf]
        %vm456 = vcmask 1046528
        %v457 = vrot.slane %v261, 1
        %v458 = vrot.slane %v271, 1
        %v459 = vsel %vm456, %v457, %v458
        %v469 = vunpack.c.l.b16 %v445
        %v470 = vunpack.c.l.b16 %v446
        %v471 = vunpack.c.l.b16 %v447
        %v472 = vunpack.c.l.b16 %v448
        %v473 = vunpack.c.l.b16 %v449
        %v474 = vunpack.c.l.b16 %v450
        %v475 = vunpack.c.l.b16 %v451
        %v476 = vunpack.c.l.b16 %v452
        %v477 = vunpack.c.l.b16 %v453
        %v478 = vpack.c.b16 %v470, %v469
        %v479 = vpack.c.b16 %v472, %v471
        %v480 = vpack.c.b16 %v474, %v473
        %v481 = vpack.c.b16 %v476, %v475
        %v482 = vpack.c.b16 %v477, %v477
        %v488 = vsel %vm322, %v459, 0
        %v491 = vsel %vm326, %v482, 0
        %493 = vmatprep.subr.bf16.mxu0 0
        %494 = vmatpush1.bf16.msra.mxu0 %v478
        %495 = vmatprep.subr.bf16.mxu0 0
        %496 = vmatpush1.bf16.msra.mxu0 %v479
        %497 = vmatprep.subr.bf16.mxu0 0
        %498 = vmatpush1.bf16.msra.mxu0 %v480
        %499 = vmatprep.subr.bf16.mxu0 0
        %500 = vmatpush1.bf16.msra.mxu0 %v481
        %501 = vmatprep.subr.bf16.mxu0 0
        %502 = vmatpush1.bf16.msra.mxu0 %v491
        %503 = vmatprep.subr.bf16.mxu0 0
        %504 = vmatpush1.bf16.msra.mxu0 0
        %505 = vmatprep.subr.bf16.mxu0 0
        %506 = vmatpush1.bf16.msra.mxu0 0
        %507 = vmatprep.subr.bf16.mxu0 0
        %508 = vmatpush1.bf16.msra.mxu0 0
        %509 = vmatprep.subr.bf16.mxu0 0
        %510 = vmatpush1.bf16.msra.mxu0 0
        %511 = vmatprep.subr.bf16.mxu0 0
        %512 = vmatpush1.bf16.msra.mxu0 0
        %513 = vmatprep.subr.bf16.mxu0 0
        %514 = vmatpush1.bf16.msra.mxu0 0
        %515 = vmatprep.subr.bf16.mxu0 0
        %516 = vmatpush1.bf16.msra.mxu0 0
        %517 = vmatprep.subr.bf16.mxu0 0
        %518 = vmatpush1.bf16.msra.mxu0 0
        %519 = vmatprep.subr.bf16.mxu0 0
        %520 = vmatpush1.bf16.msra.mxu0 0
        %521 = vmatprep.subr.bf16.mxu0 0
        %522 = vmatpush1.bf16.msra.mxu0 0
        %523 = vmatprep.subr.bf16.mxu0 0
        %524 = vmatpush1.bf16.msra.mxu0 0
        %525 = vmatprep.mubr.bf16.mxu0 0
        %526 = vmatmul.mubr.bf16.gmra.mrb[0].mxu0 %v488
        %v527 = vpop.f32.mrb[0].mxu0
        %v528 = vadd.f32 0.0, %v527
        %v529 = vpop.f32.mrb[0].mxu0
        %v530 = vpop.f32.mrb[0].mxu0
        %v531 = vadd.f32 0.0, %v530
        %v532 = vpop.f32.mrb[0].mxu0
        %533 = vdwg.mxu0
        %v534 = vadd.f32 %v438, %v528
        %v535 = vadd.f32 %v441, %v531
        %vm539 = vcmask 1046528
        %v540 = vrot.slane %v258, 1
        %v541 = vrot.slane %v259, 1
        %v542 = vsel %vm539, %v540, %v541
        %v543 = vrot.slane %v260, 1
        %v544 = vsel %vm539, %v541, %v543
        %v547 = vadd.f32 %v258, %v542
        %v548 = vadd.f32 %v259, %v544
        %v549 = vmax.f32 %v258, %v542
        %v550 = vmax.f32 %v259, %v544
        %vm551 = vcmask 1045504
        %v552 = vrot.slane %v258, 2
        %v553 = vrot.slane %v259, 2
        %v554 = vsel %vm551, %v552, %v553
        %v555 = vrot.slane %v260, 2
        %v556 = vsel %vm551, %v553, %v555
        %v559 = vadd.f32 %v547, %v554
        %v560 = vadd.f32 %v548, %v556
        %v561 = vmax.f32 %v549, %v554
        %v562 = vmax.f32 %v550, %v556
        %565 = vrot.lane.b32.xlu0 %v559, 127
        %v566 = vpop.permute.xlu0 %565
        %567 = vrot.lane.b32.xlu0 %v560, 127
        %v568 = vpop.permute.xlu0 %567
        %v571 = vadd.f32 %v559, %v566
        %v572 = vadd.f32 %v560, %v568
        %575 = vrot.lane.b32.xlu0 %v561, 127
        %v576 = vpop.permute.xlu0 %575
        %577 = vrot.lane.b32.xlu0 %v562, 127
        %v578 = vpop.permute.xlu0 %577
        %v581 = vmax.f32 %v561, %v576
        %v582 = vmax.f32 %v562, %v578
        %583 = vrot.lane.b32.xlu0 %v559, 126
        %v584 = vpop.permute.xlu0 %583
        %585 = vrot.lane.b32.xlu0 %v560, 126
        %v586 = vpop.permute.xlu0 %585
        %v589 = vadd.f32 %v571, %v584
        %v590 = vadd.f32 %v572, %v586
        %591 = vrot.lane.b32.xlu0 %v561, 126
        %v592 = vpop.permute.xlu0 %591
        %593 = vrot.lane.b32.xlu0 %v562, 126
        %v594 = vpop.permute.xlu0 %593
        %v597 = vmax.f32 %v581, %v592
        %v598 = vmax.f32 %v582, %v594
        %v599 = vadd.f32 %v589, 1e-08
        %v600 = vadd.f32 %v590, 1e-08
        %v601 = vrcp.pop %v599
        %v602 = vrcp.pop %v600
        %605 = vrot.lane.b32.xlu0 %v601, 16
        %v606 = vpop.permute.xlu0 %605
        %607 = vrot.lane.b32.xlu0 %v602, 16
        %v608 = vpop.permute.xlu0 %607
        %611 = vrot.lane.b32.xlu0 %v601, 32
        %v612 = vpop.permute.xlu0 %611
        %613 = vrot.lane.b32.xlu0 %v602, 32
        %v614 = vpop.permute.xlu0 %613
        %617 = vrot.lane.b32.xlu0 %v601, 48
        %v618 = vpop.permute.xlu0 %617
        %619 = vrot.lane.b32.xlu0 %v602, 48
        %v620 = vpop.permute.xlu0 %619
        %623 = vrot.lane.b32.xlu0 %v601, 64
        %v624 = vpop.permute.xlu0 %623
        %625 = vrot.lane.b32.xlu0 %v602, 64
        %v626 = vpop.permute.xlu0 %625
        %629 = vrot.lane.b32.xlu0 %v601, 80
        %v630 = vpop.permute.xlu0 %629
        %631 = vrot.lane.b32.xlu0 %v602, 80
        %v632 = vpop.permute.xlu0 %631
        %635 = vrot.lane.b32.xlu0 %v601, 96
        %v636 = vpop.permute.xlu0 %635
        %637 = vrot.lane.b32.xlu0 %v602, 96
        %v638 = vpop.permute.xlu0 %637
        %641 = vrot.lane.b32.xlu0 %v601, 112
        %v642 = vpop.permute.xlu0 %641
        %643 = vrot.lane.b32.xlu0 %v602, 112
        %v644 = vpop.permute.xlu0 %643
        %vm647 = vcmask 130048
        %v648 = vsel %vm647, %v601, %v606
        %v649 = vsel %vm647, %v602, %v608
        %vm650 = vcmask 261120
        %v651 = vsel %vm650, %v648, %v612
        %v652 = vsel %vm650, %v649, %v614
        %vm653 = vcmask 392192
        %v654 = vsel %vm653, %v651, %v618
        %v655 = vsel %vm653, %v652, %v620
        %vm656 = vcmask 523264
        %v657 = vsel %vm656, %v654, %v624
        %v658 = vsel %vm656, %v655, %v626
        %vm659 = vcmask 654336
        %v660 = vsel %vm659, %v657, %v630
        %v661 = vsel %vm659, %v658, %v632
        %vm662 = vcmask 785408
        %v663 = vsel %vm662, %v660, %v636
        %v664 = vsel %vm662, %v661, %v638
        %vm665 = vcmask 916480
        %v666 = vsel %vm665, %v663, %v642
        %v667 = vsel %vm665, %v664, %v644
        %v668 = vmul.f32 %v534, %v666
        %v669 = vmul.f32 %v535, %v667
        %v670 = vld [vmem:[%s3] sm:$0x1]
        %v672 = vlaneseq
        %v673 = vshrl.u32 %v672, 7
        %v674 = vsub.s32 0, %v673
        %v675 = vrot.slane %v670, %v674
        %v677 = vadd.f32 %v668, %v675
        %v678 = vadd.f32 %v669, %v675
        %v679 = vmax.f32 %v677, 0.0
        %v680 = vmax.f32 %v678, 0.0
        %681 = vst [vmem:[%s236] sm:$0xff] %v679
        %682 = vst [vmem:[%s236 + $0x8] sm:$0xff] %v680
        %683 = vst.msk [vmem:[%s243] sm:$0xff] %vm647, %v597
        %684 = vst.msk [vmem:[%s243 + $0x8] sm:$0xff] %vm647, %v598
        %s685 = sand.u32 %s125, 1
        %s686 = scalar_lea.sflag [#allocation3], %s685
        %s687 = sand.u32 %s125, 1
        %s688 = smul.addr %s687, 16
        %s689 = scalar_lea.vmem [#allocation2], %s688
        %s690 = sand.u32 %s151, 1
        %s691 = scalar_lea.sflag [#allocation5], %s690
        %s692 = sand.u32 %s151, 1
        %s693 = smul.addr %s692, 16
        %s694 = scalar_lea.vmem [#allocation4], %s693
        // Predicated region
        $region37: #{tpu_custom_call.1} parent=35 // pred_check
          %p695 = pneg %p135
        $region38: #{tpu_custom_call.1} parent=35 // pred_check_branch
          %697 = sbr.rel (%p695) target = $region40
        $region39: #{tpu_custom_call.1} parent=35 // pred_region
          %s699 = ssub.s32 256, 256
          %700 = vsyncadd %s686, %s699
          %s701 = smul.addr %s23, 2
          %s702 = smul.addr %s701, 128
          %s703 = scalar_lea.hbm %s4, %s702
          %s704 = sshll.u32 %s689, 4
          %s705 = int_to_ptr.vmem [resolvable:$true] %s704
          %710 = dma.vmem_to_hbm [thread:$0]  %s705, 256, %s703, %s686, 128, 128, 8
        $region40: #{tpu_custom_call.1} parent=35 // pred_fallthru
          _
        // Predicated region
        $region41: #{tpu_custom_call.1} parent=35 // pred_check
          %p711 = pneg %p161
        $region42: #{tpu_custom_call.1} parent=35 // pred_check_branch
          %713 = sbr.rel (%p711) target = $region44
        $region43: #{tpu_custom_call.1} parent=35 // pred_region
          %s715 = ssub.s32 256, 256
          %716 = vsyncadd %s691, %s715
          %s717 = smul.addr %s23, 2
          %s718 = smul.addr %s717, 128
          %s719 = scalar_lea.hbm %s5, %s718
          %s720 = sshll.u32 %s694, 4
          %s721 = int_to_ptr.vmem [resolvable:$true] %s720
          %726 = dma.vmem_to_hbm [thread:$0]  %s721, 256, %s719, %s691, 128, 128, 8
        $region44: #{tpu_custom_call.1} parent=35 // pred_fallthru
          _
      $region36: #{tpu_custom_call.1} parent=5 // pred_fallthru
        _
      %p727 = scmp.le.s32.totalorder 2, %s18
      // Predicated region
      $region45: #{tpu_custom_call.1} parent=5 // pred_check
        %p728 = pneg %p727
      $region46: #{tpu_custom_call.1} parent=5 // pred_check_branch
        %730 = sbr.rel (%p728) target = $region48
      $region47: #{tpu_custom_call.1} parent=5 // pred_region
        %s731 = ssub.s32 %s18, 2
        // Predicated region
        $region49: #{tpu_custom_call.1} parent=47 // pred_check
          %p732 = pneg %p141
        $region50: #{tpu_custom_call.1} parent=47 // pred_check_branch
          %734 = sbr.rel (%p732) target = $region52
        $region51: #{tpu_custom_call.1} parent=47 // pred_region
          %s735 = sand.u32 %s126, 1
          %s736 = scalar_lea.sflag [#allocation3], %s735
          %s737 = sand.u32 %s126, 1
          %s738 = smul.addr %s737, 16
          %s739 = scalar_lea.vmem [#allocation2], %s738
          %740 = dma.done %s736, 256
        $region52: #{tpu_custom_call.1} parent=47 // pred_fallthru
          _
        // Predicated region
        $region53: #{tpu_custom_call.1} parent=47 // pred_check
          %p741 = pneg %p167
        $region54: #{tpu_custom_call.1} parent=47 // pred_check_branch
          %743 = sbr.rel (%p741) target = $region56
        $region55: #{tpu_custom_call.1} parent=47 // pred_region
          %s744 = sand.u32 %s152, 1
          %s745 = scalar_lea.sflag [#allocation5], %s744
          %s746 = sand.u32 %s152, 1
          %s747 = smul.addr %s746, 16
          %s748 = scalar_lea.vmem [#allocation4], %s747
          %749 = dma.done %s745, 256
        $region56: #{tpu_custom_call.1} parent=47 // pred_fallthru
          _
      $region48: #{tpu_custom_call.1} parent=5 // pred_fallthru
        _
    $region6: #{tpu_custom_call.1} parent=1 // loop_footer
      %s22 = sadd.s32 1, %s18
    $region7: #{tpu_custom_call.1} parent=1 // loop_footer_branch
      %17 = sbr.rel target = $region3
    $region8: #{tpu_custom_call.1} parent=1 // loop_exit
      _
    %750 = vsyncpa [#allocation3], 1
    %s751 = scalar_lea.sflag [#allocation3], 1
    %752 = vsyncpa %s751, 1
    %753 = vsyncpa [#allocation5], 1
    %s754 = scalar_lea.sflag [#allocation5], 1
    %755 = vsyncpa %s754, 1

</llo_original>
